<compile_context>
chip_gen: v6e
topology: v6e:2x2x1
jax: 0.10.0
libtpu: 0.0.40
codegen_flags: <defaults>
</compile_context>

<pallas_src>
import functools

import jax
import jax.numpy as jnp
import numpy as np
from jax.experimental import pallas as pl
from jax.experimental.pallas import tpu as pltpu

EPS = 1e-12  # F.normalize(p=1) eps default


def _round_up(v, m):
    return ((v + m - 1) // m) * m


def _lrelu(x, slope=0.2):
    # nn.LeakyReLU(0.2)
    return jnp.where(x > 0, x, slope * x)


def _vmem_limit_bytes():
    try:
        cap = int(pltpu.get_tpu_info().vmem_capacity_bytes)
    except Exception:
        cap = 64 * 1024 * 1024  # conservative (v7x per-TC physical)
    # Leave headroom for internal scratch; cap at 100 MiB on 128 MiB parts.
    return int(min(max(cap - 16 * 1024 * 1024, 32 * 1024 * 1024), 100 * 1024 * 1024))


def transgcn_kernel(adj_ref, xall_ref, xt_ref, g1_ref, g2_ref, b1_ref, b2_ref,
                    r_ref, w_ref, out_ref, acc_ref, *, head):
    k = pl.program_id(1)

    @pl.when(k == 0)
    def _():
        acc_ref[...] = jnp.zeros_like(acc_ref)

    # The only N^2-scale work: acc += adj_blk @ [x | 1]_blk
    #   acc[:, :F] accumulates s = adj @ x
    #   acc[:,  F] accumulates the row degree (exact, f32-accumulated)
    acc_ref[...] += jnp.dot(adj_ref[...], xall_ref[...],
                            preferred_element_type=jnp.float32)

    @pl.when(k == pl.num_programs(1) - 1)
    def _():
        f = xt_ref.shape[1]
        x = xt_ref[...]                      # (TM, F)  f32 row tile
        acc = acc_ref[...]                   # (TM, F+1)
        s = acc[:, :f]                       # adj @ x
        row_l1 = acc[:, f:f + 1]             # degree  (== L1 row norm, adj >= 0)

        # neighbor = F.normalize(adj, p=1, dim=1) @ x  ==  s / max(deg, eps)
        neighbor = s * pl.reciprocal(jnp.maximum(row_l1, EPS), approx=False)

        # Relation (ver=1, ablation=0) — separate small matmuls, no lane concat.
        gamma = _lrelu(
            jnp.dot(x, g1_ref[...], preferred_element_type=jnp.float32)
            + jnp.dot(neighbor, g2_ref[...], preferred_element_type=jnp.float32)) + 1.0
        beta = _lrelu(
            jnp.dot(x, b1_ref[...], preferred_element_type=jnp.float32)
            + jnp.dot(neighbor, b2_ref[...], preferred_element_type=jnp.float32))
        output = x + (gamma * r_ref[...] + beta) - neighbor     # transE shift

        # GraphConv with adj + I, folded:  (adj+I) @ x == s + x
        sx = s + x
        w = w_ref[...]
        if head:
            # norm = F.normalize(adj+I, p=1, dim=1); h_k = norm @ (x @ W)
            hk = jnp.dot(sx, w, preferred_element_type=jnp.float32) \
                 * pl.reciprocal(row_l1 + 1.0, approx=False)
        else:
            # h_k = ((adj+I)@x + output) @ W / (rowsum(adj+I) + 1)
            hk = jnp.dot(sx + output, w, preferred_element_type=jnp.float32) \
                 * pl.reciprocal(row_l1 + 2.0, approx=False)

        # Lane-dense output slab: [h_k | output | 0-pad to multiple of 128]
        h = w.shape[1]
        tm = x.shape[0]
        pad = out_ref.shape[1] - (h + f)
        pieces = [hk, output]
        if pad:
            pieces.append(jnp.zeros((tm, pad), jnp.float32))
        out_ref[...] = jnp.concatenate(pieces, axis=-1)


def transgcn_forward(x, adj, params, head, *, tm=256, tk=512,
                     matmul_dtype=jnp.bfloat16):
    """Fused TransGCN forward.  adj must be non-negative (e.g. binary)."""
    n, f = x.shape
    h = params["gc_weight"].shape[1]

    # Row / contraction tiles: pad N up to the tile size instead of shrinking.
    tm = max(8, min(_round_up(tm, 8), _round_up(n, 8)))
    tk = max(128, min(_round_up(tk, 128), _round_up(n, 128)))
    n_rows = _round_up(n, tm)       # padded row count     (grid axis 0: n_rows // tm)
    n_cols = _round_up(n, tk)       # padded column count  (grid axis 1: n_cols // tk)

    # Streamed matmul operands (bf16 by default: binary adjacency exact; halves
    # adjacency DMA and doubles MXU rate on v6e/v7x).
    adj_p = jnp.zeros((n_rows, n_cols), matmul_dtype).at[:n, :n].set(
        adj.astype(matmul_dtype))
    # x with an appended ones column → degree comes out of the aggregation matmul.
    xall = jnp.zeros((n_cols, f + 1), matmul_dtype)
    xall = xall.at[:n, :f].set(x.astype(matmul_dtype))
    xall = xall.at[:n, f].set(1.0)

    # f32 per-row-tile operands for the elementwise / Relation path.
    xt = jnp.zeros((n_rows, f), jnp.float32).at[:n, :].set(x.astype(jnp.float32))
    g1 = params["gamma1"].astype(jnp.float32)
    g2 = params["gamma2"].astype(jnp.float32)
    b1 = params["beta1"].astype(jnp.float32)
    b2 = params["beta2"].astype(jnp.float32)
    r = params["r"].astype(jnp.float32)
    w = params["gc_weight"].astype(jnp.float32)

    out_pad = _round_up(h + f, 128)   # lane-dense stores (vst, not vst.msk)

    kernel = functools.partial(transgcn_kernel, head=head)
    itemsize_mm = jnp.dtype(matmul_dtype).itemsize
    cost = pl.CostEstimate(
        flops=int(2 * n_rows * n_cols * (f + 1)
                  + 2 * n_rows * (4 * f * f + 2 * f * h)
                  + 12 * n_rows * f),
        transcendentals=0,
        bytes_accessed=int(n_rows * n_cols * itemsize_mm
                           + n_cols * (f + 1) * itemsize_mm
                           + n_rows * f * 4
                           + 4 * f * f * 4 + f * h * 4 + f * 4
                           + n_rows * out_pad * 4),
    )

    out = pl.pallas_call(
        kernel,
        grid=(n_rows // tm, n_cols // tk),
        in_specs=[
            pl.BlockSpec((tm, tk), lambda i, k: (i, k)),        # adj block (streamed)
            pl.BlockSpec((tk, f + 1), lambda i, k: (k, 0)),     # [x | 1] block
            pl.BlockSpec((tm, f), lambda i, k: (i, 0)),         # x row tile (f32)
            pl.BlockSpec((f, f), lambda i, k: (0, 0)),          # gamma1
            pl.BlockSpec((f, f), lambda i, k: (0, 0)),          # gamma2
            pl.BlockSpec((f, f), lambda i, k: (0, 0)),          # beta1
            pl.BlockSpec((f, f), lambda i, k: (0, 0)),          # beta2
            pl.BlockSpec((1, f), lambda i, k: (0, 0)),          # r
            pl.BlockSpec((f, h), lambda i, k: (0, 0)),          # GraphConv weight
        ],
        out_specs=pl.BlockSpec((tm, out_pad), lambda i, k: (i, 0)),
        out_shape=jax.ShapeDtypeStruct((n_rows, out_pad), jnp.float32),
        scratch_shapes=[pltpu.VMEM((tm, f + 1), jnp.float32)],  # s | degree accumulator
        compiler_params=pltpu.CompilerParams(
            dimension_semantics=("parallel", "arbitrary"),
            vmem_limit_bytes=_vmem_limit_bytes(),
        ),
        cost_estimate=cost,
    )(adj_p, xall, xt, g1, g2, b1, b2, r, w)

    h_k = out[:n, :h]
    output = out[:n, h:h + f]
    return h_k, output


def transgcn_reference(x, adj, params, head):
    """Pure-JAX reference mirroring the PyTorch forward (ver=1, ablation=0)."""
    row_l1 = jnp.sum(jnp.abs(adj), axis=1, keepdims=True)
    mean = adj / jnp.maximum(row_l1, EPS)
    neighbor = mean @ x
    gamma = _lrelu(x @ params["gamma1"] + neighbor @ params["gamma2"]) + 1.0
    beta = _lrelu(x @ params["beta1"] + neighbor @ params["beta2"])
    output = x + (gamma * params["r"] + beta) - neighbor
    adj_i = adj + jnp.eye(adj.shape[0], dtype=adj.dtype)
    if head:
        norm = adj_i / jnp.maximum(jnp.sum(jnp.abs(adj_i), axis=1, keepdims=True), EPS)
        h_k = norm @ (x @ params["gc_weight"])
    else:
        h_k = adj_i @ (x @ params["gc_weight"]) + output @ params["gc_weight"]
        h_k = h_k / (jnp.sum(adj_i, axis=1, keepdims=True) + 1.0)
    return h_k, output


if __name__ == "__main__":
    N, NFEAT, NHID = 64, 32, 32

    key = jax.random.PRNGKey(0)
    kx, kadj, kg1, kg2, kb1, kb2, kr, kw = jax.random.split(key, 8)

    x = jax.random.normal(kx, (N, NFEAT), dtype=jnp.float32)
    adj = (jax.random.uniform(kadj, (N, N)) < 0.15).astype(jnp.float32)  # binary, >= 0

    def uinit(k, shape, fan):
        bound = 1.0 / np.sqrt(fan)
        return jax.random.uniform(k, shape, jnp.float32, -bound, bound)

    params = {
        # Relation linear layers (bias=False), stored (in, out)
        "gamma1": uinit(kg1, (NFEAT, NFEAT), NFEAT),
        "gamma2": uinit(kg2, (NFEAT, NFEAT), NFEAT),
        "beta1": uinit(kb1, (NFEAT, NFEAT), NFEAT),
        "beta2": uinit(kb2, (NFEAT, NFEAT), NFEAT),
        "r": uinit(kr, (1, NFEAT), NFEAT),
        # GraphConv weight (in_features, out_features)
        "gc_weight": uinit(kw, (NFEAT, NHID), NFEAT),
    }

    ok = True

    # f32 matmul operands — tight tolerance (only reassociation differences).
    for head in (False, True):
        h_k, output = transgcn_forward(x, adj, params, head,
                                       tm=32, tk=128, matmul_dtype=jnp.float32)
        jax.block_until_ready((h_k, output))
        hk_ref, out_ref = transgcn_reference(x, adj, params, head)
        ok &= bool(jnp.allclose(h_k, hk_ref, atol=2e-3, rtol=2e-3))
        ok &= bool(jnp.allclose(output, out_ref, atol=2e-3, rtol=2e-3))

    # Default bf16 streamed operands (binary adjacency exact; x cast is the only
    # perturbation) — checked at a correspondingly looser tolerance.
    for head in (False, True):
        h_k, output = transgcn_forward(x, adj, params, head, tm=32, tk=128)
        jax.block_until_ready((h_k, output))
        hk_ref, out_ref = transgcn_reference(x, adj, params, head)
        ok &= bool(jnp.allclose(h_k, hk_ref, atol=5e-2, rtol=5e-2))
        ok &= bool(jnp.allclose(output, out_ref, atol=5e-2, rtol=5e-2))

    if ok:
        print("KERNEL_OK")
    else:
        print("MISMATCH")
</pallas_src>

<mosaic_0001>
module attributes {stable_mosaic.version = 11 : i64} {
  func.func @transgcn_kernel(%arg0: i32, %arg1: i32, %arg2: memref<32x128xf32, #tpu.memory_space<vmem>>, %arg3: memref<128x33xf32, #tpu.memory_space<vmem>>, %arg4: memref<32x32xf32, #tpu.memory_space<vmem>>, %arg5: memref<32x32xf32, #tpu.memory_space<vmem>>, %arg6: memref<32x32xf32, #tpu.memory_space<vmem>>, %arg7: memref<32x32xf32, #tpu.memory_space<vmem>>, %arg8: memref<32x32xf32, #tpu.memory_space<vmem>>, %arg9: memref<1x32xf32, #tpu.memory_space<vmem>>, %arg10: memref<32x32xf32, #tpu.memory_space<vmem>>, %arg11: memref<32x128xf32, #tpu.memory_space<vmem>>, %arg12: memref<32x33xf32, #tpu.memory_space<vmem>>) attributes {dimension_semantics = [#tpu.dimension_semantics<parallel>, #tpu.dimension_semantics<arbitrary>], iteration_bounds = array<i64: 2, 1>, scalar_prefetch = 0 : i64, scratch_operands = 1 : i64, tpu.core_type = #tpu.core_type<tc>, window_params = [{transform_indices = @transform_0, window_bounds = array<i64: 32, 128>}, {transform_indices = @transform_1, window_bounds = array<i64: 128, 33>}, {transform_indices = @transform_2, window_bounds = array<i64: 32, 32>}, {pipeline_mode = #tpu.pipeline_mode<synchronous>, transform_indices = @transform_3, window_bounds = array<i64: 32, 32>}, {pipeline_mode = #tpu.pipeline_mode<synchronous>, transform_indices = @transform_4, window_bounds = array<i64: 32, 32>}, {pipeline_mode = #tpu.pipeline_mode<synchronous>, transform_indices = @transform_5, window_bounds = array<i64: 32, 32>}, {pipeline_mode = #tpu.pipeline_mode<synchronous>, transform_indices = @transform_6, window_bounds = array<i64: 32, 32>}, {pipeline_mode = #tpu.pipeline_mode<synchronous>, transform_indices = @transform_7, window_bounds = array<i64: 1, 32>}, {pipeline_mode = #tpu.pipeline_mode<synchronous>, transform_indices = @transform_8, window_bounds = array<i64: 32, 32>}, {transform_indices = @transform_9, window_bounds = array<i64: 32, 128>}]} {
    %c0_i32 = arith.constant 0 : i32
    %0 = arith.cmpi eq, %arg1, %c0_i32 : i32
    %1 = arith.extui %0 : i1 to i32
    %c0_i32_0 = arith.constant 0 : i32
    %2 = arith.cmpi ne, %1, %c0_i32_0 : i32
    scf.if %2 {
      %cst_10 = arith.constant 0.000000e+00 : f32
      %12 = vector.broadcast %cst_10 : f32 to vector<32x33xf32>
      %c0_11 = arith.constant 0 : index
      %c0_12 = arith.constant 0 : index
      %13 = vector.load %arg12[%c0_11, %c0_12] : memref<32x33xf32, #tpu.memory_space<vmem>>, vector<32x33xf32>
      tpu.vector_store %arg12[%c0_11, %c0_12], %12 {strides = array<i32>} : memref<32x33xf32, #tpu.memory_space<vmem>>, vector<32x33xf32>,
    } else {
    }
    %c0 = arith.constant 0 : index
    %c0_1 = arith.constant 0 : index
    %3 = vector.load %arg12[%c0, %c0_1] : memref<32x33xf32, #tpu.memory_space<vmem>>, vector<32x33xf32>
    %c0_2 = arith.constant 0 : index
    %c0_3 = arith.constant 0 : index
    %4 = vector.load %arg2[%c0_2, %c0_3] : memref<32x128xf32, #tpu.memory_space<vmem>>, vector<32x128xf32>
    %c0_4 = arith.constant 0 : index
    %c0_5 = arith.constant 0 : index
    %5 = vector.load %arg3[%c0_4, %c0_5] : memref<128x33xf32, #tpu.memory_space<vmem>>, vector<128x33xf32>
    %cst = arith.constant dense<0.000000e+00> : vector<32x33xf32>
    %6 = tpu.matmul %4, %5, %cst {dimension_numbers = #tpu.dot_dimension_numbers<[1], [0], [0], [1], [0, 0, 1, 1], [], []>} : vector<32x128xf32>, vector<128x33xf32>, vector<32x33xf32> -> vector<32x33xf32>
    %7 = arith.addf %3, %6 : vector<32x33xf32>
    %c0_6 = arith.constant 0 : index
    %c0_7 = arith.constant 0 : index
    %8 = vector.load %arg12[%c0_6, %c0_7] : memref<32x33xf32, #tpu.memory_space<vmem>>, vector<32x33xf32>
    tpu.vector_store %arg12[%c0_6, %c0_7], %7 {strides = array<i32>} : memref<32x33xf32, #tpu.memory_space<vmem>>, vector<32x33xf32>,
    %c0_i32_8 = arith.constant 0 : i32
    %9 = arith.cmpi eq, %arg1, %c0_i32_8 : i32
    %10 = arith.extui %9 : i1 to i32
    %c0_i32_9 = arith.constant 0 : i32
    %11 = arith.cmpi ne, %10, %c0_i32_9 : i32
    scf.if %11 {
      %c0_10 = arith.constant 0 : index
      %c0_11 = arith.constant 0 : index
      %12 = vector.load %arg4[%c0_10, %c0_11] : memref<32x32xf32, #tpu.memory_space<vmem>>, vector<32x32xf32>
      %c0_12 = arith.constant 0 : index
      %c0_13 = arith.constant 0 : index
      %13 = vector.load %arg12[%c0_12, %c0_13] : memref<32x33xf32, #tpu.memory_space<vmem>>, vector<32x33xf32>
      %14 = vector.extract_strided_slice %13 {offsets = [0, 0], sizes = [32, 32], strides = [1, 1]} : vector<32x33xf32> to vector<32x32xf32>
      %15 = vector.extract_strided_slice %13 {offsets = [0, 32], sizes = [32, 1], strides = [1, 1]} : vector<32x33xf32> to vector<32x1xf32>
      %cst_14 = arith.constant 9.99999996E-13 : f32
      %16 = vector.broadcast %cst_14 : f32 to vector<32x1xf32>
      %17 = arith.maximumf %15, %16 : vector<32x1xf32>
      %18 = tpu.reciprocal %17 : vector<32x1xf32> -> vector<32x1xf32>
      %19 = vector.broadcast %18 : vector<32x1xf32> to vector<32x32xf32>
      %20 = arith.mulf %14, %19 : vector<32x32xf32>
      %c0_15 = arith.constant 0 : index
      %c0_16 = arith.constant 0 : index
      %21 = vector.load %arg5[%c0_15, %c0_16] : memref<32x32xf32, #tpu.memory_space<vmem>>, vector<32x32xf32>
      %cst_17 = arith.constant dense<0.000000e+00> : vector<32x32xf32>
      %22 = tpu.matmul %12, %21, %cst_17 {dimension_numbers = #tpu.dot_dimension_numbers<[1], [0], [0], [1], [0, 0, 1, 1], [], []>} : vector<32x32xf32>, vector<32x32xf32>, vector<32x32xf32> -> vector<32x32xf32>
      %c0_18 = arith.constant 0 : index
      %c0_19 = arith.constant 0 : index
      %23 = vector.load %arg6[%c0_18, %c0_19] : memref<32x32xf32, #tpu.memory_space<vmem>>, vector<32x32xf32>
      %cst_20 = arith.constant dense<0.000000e+00> : vector<32x32xf32>
      %24 = tpu.matmul %20, %23, %cst_20 {dimension_numbers = #tpu.dot_dimension_numbers<[1], [0], [0], [1], [0, 0, 1, 1], [], []>} : vector<32x32xf32>, vector<32x32xf32>, vector<32x32xf32> -> vector<32x32xf32>
      %25 = arith.addf %22, %24 : vector<32x32xf32>
      %cst_21 = arith.constant 0.000000e+00 : f32
      %26 = vector.broadcast %cst_21 : f32 to vector<32x32xf32>
      %27 = arith.cmpf ogt, %25, %26 : vector<32x32xf32>
      %cst_22 = arith.constant 2.000000e-01 : f32
      %28 = vector.broadcast %cst_22 : f32 to vector<32x32xf32>
      %29 = arith.mulf %28, %25 : vector<32x32xf32>
      %30 = arith.select %27, %25, %29 : vector<32x32xi1>, vector<32x32xf32>
      %cst_23 = arith.constant 1.000000e+00 : f32
      %31 = vector.broadcast %cst_23 : f32 to vector<32x32xf32>
      %32 = arith.addf %30, %31 : vector<32x32xf32>
      %c0_24 = arith.constant 0 : index
      %c0_25 = arith.constant 0 : index
      %33 = vector.load %arg7[%c0_24, %c0_25] : memref<32x32xf32, #tpu.memory_space<vmem>>, vector<32x32xf32>
      %cst_26 = arith.constant dense<0.000000e+00> : vector<32x32xf32>
      %34 = tpu.matmul %12, %33, %cst_26 {dimension_numbers = #tpu.dot_dimension_numbers<[1], [0], [0], [1], [0, 0, 1, 1], [], []>} : vector<32x32xf32>, vector<32x32xf32>, vector<32x32xf32> -> vector<32x32xf32>
      %c0_27 = arith.constant 0 : index
      %c0_28 = arith.constant 0 : index
      %35 = vector.load %arg8[%c0_27, %c0_28] : memref<32x32xf32, #tpu.memory_space<vmem>>, vector<32x32xf32>
      %cst_29 = arith.constant dense<0.000000e+00> : vector<32x32xf32>
      %36 = tpu.matmul %20, %35, %cst_29 {dimension_numbers = #tpu.dot_dimension_numbers<[1], [0], [0], [1], [0, 0, 1, 1], [], []>} : vector<32x32xf32>, vector<32x32xf32>, vector<32x32xf32> -> vector<32x32xf32>
      %37 = arith.addf %34, %36 : vector<32x32xf32>
      %cst_30 = arith.constant 0.000000e+00 : f32
      %38 = vector.broadcast %cst_30 : f32 to vector<32x32xf32>
      %39 = arith.cmpf ogt, %37, %38 : vector<32x32xf32>
      %cst_31 = arith.constant 2.000000e-01 : f32
      %40 = vector.broadcast %cst_31 : f32 to vector<32x32xf32>
      %41 = arith.mulf %40, %37 : vector<32x32xf32>
      %42 = arith.select %39, %37, %41 : vector<32x32xi1>, vector<32x32xf32>
      %c0_32 = arith.constant 0 : index
      %c0_33 = arith.constant 0 : index
      %43 = vector.load %arg9[%c0_32, %c0_33] : memref<1x32xf32, #tpu.memory_space<vmem>>, vector<1x32xf32>
      %44 = vector.broadcast %43 : vector<1x32xf32> to vector<32x32xf32>
      %45 = arith.mulf %32, %44 : vector<32x32xf32>
      %46 = arith.addf %45, %42 : vector<32x32xf32>
      %47 = arith.addf %12, %46 : vector<32x32xf32>
      %48 = arith.subf %47, %20 : vector<32x32xf32>
      %49 = arith.addf %14, %12 : vector<32x32xf32>
      %c0_34 = arith.constant 0 : index
      %c0_35 = arith.constant 0 : index
      %50 = vector.load %arg10[%c0_34, %c0_35] : memref<32x32xf32, #tpu.memory_space<vmem>>, vector<32x32xf32>
      %51 = arith.addf %49, %48 : vector<32x32xf32>
      %cst_36 = arith.constant dense<0.000000e+00> : vector<32x32xf32>
      %52 = tpu.matmul %51, %50, %cst_36 {dimension_numbers = #tpu.dot_dimension_numbers<[1], [0], [0], [1], [0, 0, 1, 1], [], []>} : vector<32x32xf32>, vector<32x32xf32>, vector<32x32xf32> -> vector<32x32xf32>
      %cst_37 = arith.constant 2.000000e+00 : f32
      %53 = vector.broadcast %cst_37 : f32 to vector<32x1xf32>
      %54 = arith.addf %15, %53 : vector<32x1xf32>
      %55 = tpu.reciprocal %54 : vector<32x1xf32> -> vector<32x1xf32>
      %56 = vector.broadcast %55 : vector<32x1xf32> to vector<32x32xf32>
      %57 = arith.mulf %52, %56 : vector<32x32xf32>
      %cst_38 = arith.constant 0.000000e+00 : f32
      %58 = vector.broadcast %cst_38 : f32 to vector<32x64xf32>
      %59 = tpu.concatenate %57, %48, %58 in 1 : vector<32x32xf32>, vector<32x32xf32>, vector<32x64xf32> -> vector<32x128xf32>
      %c0_39 = arith.constant 0 : index
      %c0_40 = arith.constant 0 : index
      %60 = vector.load %arg11[%c0_39, %c0_40] : memref<32x128xf32, #tpu.memory_space<vmem>>, vector<32x128xf32>
      tpu.vector_store %arg11[%c0_39, %c0_40], %59 {strides = array<i32>} : memref<32x128xf32, #tpu.memory_space<vmem>>, vector<32x128xf32>,
    } else {
    }
    return
  }
  func.func @transform_0(%arg0: i32, %arg1: i32) -> (i32, i32) {
    %c0_i32 = arith.constant 0 : i32
    return %arg0, %arg1 : i32, i32
  }
  func.func @transform_1(%arg0: i32, %arg1: i32) -> (i32, i32) {
    %c0_i32 = arith.constant 0 : i32
    %c0_i32_0 = arith.constant 0 : i32
    return %arg1, %c0_i32 : i32, i32
  }
  func.func @transform_2(%arg0: i32, %arg1: i32) -> (i32, i32) {
    %c0_i32 = arith.constant 0 : i32
    %c0_i32_0 = arith.constant 0 : i32
    return %arg0, %c0_i32 : i32, i32
  }
  func.func @transform_3(%arg0: i32, %arg1: i32) -> (i32, i32) {
    %c0_i32 = arith.constant 0 : i32
    %c0_i32_0 = arith.constant 0 : i32
    %c0_i32_1 = arith.constant 0 : i32
    return %c0_i32, %c0_i32_0 : i32, i32
  }
  func.func @transform_4(%arg0: i32, %arg1: i32) -> (i32, i32) {
    %c0_i32 = arith.constant 0 : i32
    %c0_i32_0 = arith.constant 0 : i32
    %c0_i32_1 = arith.constant 0 : i32
    return %c0_i32, %c0_i32_0 : i32, i32
  }
  func.func @transform_5(%arg0: i32, %arg1: i32) -> (i32, i32) {
    %c0_i32 = arith.constant 0 : i32
    %c0_i32_0 = arith.constant 0 : i32
    %c0_i32_1 = arith.constant 0 : i32
    return %c0_i32, %c0_i32_0 : i32, i32
  }
  func.func @transform_6(%arg0: i32, %arg1: i32) -> (i32, i32) {
    %c0_i32 = arith.constant 0 : i32
    %c0_i32_0 = arith.constant 0 : i32
    %c0_i32_1 = arith.constant 0 : i32
    return %c0_i32, %c0_i32_0 : i32, i32
  }
  func.func @transform_7(%arg0: i32, %arg1: i32) -> (i32, i32) {
    %c0_i32 = arith.constant 0 : i32
    %c0_i32_0 = arith.constant 0 : i32
    %c0_i32_1 = arith.constant 0 : i32
    return %c0_i32, %c0_i32_0 : i32, i32
  }
  func.func @transform_8(%arg0: i32, %arg1: i32) -> (i32, i32) {
    %c0_i32 = arith.constant 0 : i32
    %c0_i32_0 = arith.constant 0 : i32
    %c0_i32_1 = arith.constant 0 : i32
    return %c0_i32, %c0_i32_0 : i32, i32
  }
  func.func @transform_9(%arg0: i32, %arg1: i32) -> (i32, i32) {
    %c0_i32 = arith.constant 0 : i32
    %c0_i32_0 = arith.constant 0 : i32
    return %arg0, %c0_i32 : i32, i32
  }
}

</mosaic_0001>

<llo_original>
// kernel: tpu_custom_call.1
$region0: #{tpu_custom_call.1}
  #allocation0 [shape = 'u32[]', space=smem, size = 0x4, offset = 0x4, fixed_abs, tag = 'smem constant byte address 0x4 - core index']
  #allocation1 [shape = 'u32[144,128]{1,0:T(1,128)}', space=vmem, size = 0x12000, scoped, tag = 'internal scratch']
  #allocation2 [shape = 'f32[32,33]{1,0:T(8,128)}', space=vmem, size = 0x4000, scoped, tag = 'scratch operand']
  %s0 = inlined_call_operand.vmem [shape: f32[64,128], index: 0, kind: input, shape index: {}]
  %s1 = inlined_call_operand.vmem [shape: f32[128,33], index: 1, kind: input, shape index: {}]
  %s2 = inlined_call_operand.vmem [shape: f32[64,32], index: 2, kind: input, shape index: {}]
  %s3 = inlined_call_operand.vmem [shape: f32[32,32], index: 3, kind: input, shape index: {}]
  %s4 = inlined_call_operand.vmem [shape: f32[32,32], index: 4, kind: input, shape index: {}]
  %s5 = inlined_call_operand.vmem [shape: f32[32,32], index: 5, kind: input, shape index: {}]
  %s6 = inlined_call_operand.vmem [shape: f32[32,32], index: 6, kind: input, shape index: {}]
  %s7 = inlined_call_operand.vmem [shape: f32[1,32], index: 7, kind: input, shape index: {}]
  %s8 = inlined_call_operand.vmem [shape: f32[32,32], index: 8, kind: input, shape index: {}]
  %s9 = inlined_call_operand.hbm [shape: f32[64,128], index: 9, kind: output, shape index: {}]
  %s10 = sld [smem:[#allocation0]]
  $region77: #{tpu_custom_call.1} parent=0
    _
  %s12 = ssub.s32 1, %s10
  %s13 = scalar_select 0, %s12, %s10
  $region1: #{tpu_custom_call.1} parent=0
    #allocation3 [shape = 'u8[32768]{0}', space=vmem, size = 0x8000, scoped, tag = 'output window, operand 0']
    #allocation4 [shape = 's32[2]{0}', space=sflag, size = 0x8, scoped, tag = 'scoped memory for tpu_custom_call.1']
    %14 = vsyncpa [#allocation4], 0
    %s15 = scalar_lea.sflag [#allocation4], 1
    %16 = vsyncpa %s15, 0
    loop: start=0, step=1, limit=4
    $region2: #{tpu_custom_call.1} parent=1 // loop_pre_header
      _
    $region3: #{tpu_custom_call.1} parent=1 // loop_header
      %s18 = sphi 0, %s22
      %p19 = scmp.ge.s32.totalorder %s18, 4
      %s25 = sphi 0, %s37
      %s26 = sphi 0, %s33
      %s27 = sphi 0, %s25
      %s28 = sphi 0, %s26
      %s29 = sphi 0, %s27
      %s30 = sphi 0, %s28
      %s42 = sphi 0, %s44
      %s45 = sphi 0, %s42
      %s46 = sphi 0, %s45
      %s62 = sphi 0, %s46
      %s68 = sphi 0, %s70
      %s71 = sphi 0, %s68
      %s72 = sphi 0, %s71
      %s88 = sphi 0, %s72
      %s94 = sphi 0, %s96
      %s97 = sphi 0, %s94
      %s98 = sphi 0, %s97
      %s114 = sphi 0, %s98
      %s118 = sphi 0, %s118
      %s120 = sphi 0, %s118
      %s121 = sphi 0, %s120
      %s135 = sphi 0, %s121
      %s139 = sphi 0, %s139
      %s141 = sphi 0, %s139
      %s142 = sphi 0, %s141
      %s156 = sphi 0, %s142
      %s160 = sphi 0, %s160
      %s162 = sphi 0, %s160
      %s163 = sphi 0, %s162
      %s177 = sphi 0, %s163
      %s181 = sphi 0, %s181
      %s183 = sphi 0, %s181
      %s184 = sphi 0, %s183
      %s198 = sphi 0, %s184
      %s202 = sphi 0, %s202
      %s204 = sphi 0, %s202
      %s205 = sphi 0, %s204
      %s219 = sphi 0, %s205
      %s223 = sphi 0, %s223
      %s225 = sphi 0, %s223
      %s226 = sphi 0, %s225
      %s240 = sphi 0, %s226
      %s246 = sphi 0, %s248
      %s249 = sphi 0, %s246
      %s250 = sphi 0, %s249
      %s266 = sphi 0, %s250
    $region4: #{tpu_custom_call.1} parent=1 // loop_header_branch
      %21 = sbr.rel (%p19) target = $region8
    $region5: #{tpu_custom_call.1} parent=1 // loop_body
      %s23 = ssub.s32 %s18, 1
      %s24 = ssub.s32 %s18, 2
      %s31 = sadd.s32 1, %s26
      %p32 = scmp.ge.s32.totalorder %s31, 1
      %s33 = scalar_select %p32, 0, %s31
      %s34 = sadd.s32 1, %s25
      %s35 = scalar_select %p32, %s34, %s25
      %p36 = scmp.ge.s32.totalorder %s35, 2
      %s37 = scalar_select %p36, 0, %s35
      %s38 = ssub.s32 %s25, %s37
      %s39 = ssub.s32 %s26, %s33
      %s40 = sor.u32 %s38, %s39
      %p41 = scmp.eq.s32.totalorder %s40, 0
      %s43 = sadd.s32 %s42, 1
      %s44 = scalar_select %p41, %s42, %s43
      %p47 = pneg %p41
      %p48 = scmp.eq.s32.totalorder %s18, 1
      %p49 = por %p47, %p48
      %p50 = scmp.ne.s32.totalorder %s42, %s45
      %p51 = scmp.eq.s32.totalorder %s18, 0
      %p52 = por %p50, %p51
      %p53 = scmp.ne.s32.totalorder %s42, %s45
      %p54 = scmp.eq.s32.totalorder %s23, 1
      %p55 = por %p53, %p54
      %p56 = scmp.ne.s32.totalorder %s45, %s46
      %p57 = scmp.eq.s32.totalorder %s23, 0
      %p58 = por %p56, %p57
      %p59 = scmp.ne.s32.totalorder %s45, %s46
      %p60 = scmp.eq.s32.totalorder %s24, 1
      %p61 = por %p59, %p60
      %p63 = scmp.ne.s32.totalorder %s46, %s62
      %p64 = scmp.eq.s32.totalorder %s24, 0
      %p65 = por %p63, %p64
      %s66 = ssub.s32 %s26, %s33
      %p67 = scmp.eq.s32.totalorder %s66, 0
      %s69 = sadd.s32 %s68, 1
      %s70 = scalar_select %p67, %s68, %s69
      %p73 = pneg %p67
      %p74 = scmp.eq.s32.totalorder %s18, 1
      %p75 = por %p73, %p74
      %p76 = scmp.ne.s32.totalorder %s68, %s71
      %p77 = scmp.eq.s32.totalorder %s18, 0
      %p78 = por %p76, %p77
      %p79 = scmp.ne.s32.totalorder %s68, %s71
      %p80 = scmp.eq.s32.totalorder %s23, 1
      %p81 = por %p79, %p80
      %p82 = scmp.ne.s32.totalorder %s71, %s72
      %p83 = scmp.eq.s32.totalorder %s23, 0
      %p84 = por %p82, %p83
      %p85 = scmp.ne.s32.totalorder %s71, %s72
      %p86 = scmp.eq.s32.totalorder %s24, 1
      %p87 = por %p85, %p86
      %p89 = scmp.ne.s32.totalorder %s72, %s88
      %p90 = scmp.eq.s32.totalorder %s24, 0
      %p91 = por %p89, %p90
      %s92 = ssub.s32 %s25, %s37
      %p93 = scmp.eq.s32.totalorder %s92, 0
      %s95 = sadd.s32 %s94, 1
      %s96 = scalar_select %p93, %s94, %s95
      %p99 = pneg %p93
      %p100 = scmp.eq.s32.totalorder %s18, 1
      %p101 = por %p99, %p100
      %p102 = scmp.ne.s32.totalorder %s94, %s97
      %p103 = scmp.eq.s32.totalorder %s18, 0
      %p104 = por %p102, %p103
      %p105 = scmp.ne.s32.totalorder %s94, %s97
      %p106 = scmp.eq.s32.totalorder %s23, 1
      %p107 = por %p105, %p106
      %p108 = scmp.ne.s32.totalorder %s97, %s98
      %p109 = scmp.eq.s32.totalorder %s23, 0
      %p110 = por %p108, %p109
      %p111 = scmp.ne.s32.totalorder %s97, %s98
      %p112 = scmp.eq.s32.totalorder %s24, 1
      %p113 = por %p111, %p112
      %p115 = scmp.ne.s32.totalorder %s98, %s114
      %p116 = scmp.eq.s32.totalorder %s24, 0
      %p117 = por %p115, %p116
      %s119 = sadd.s32 %s118, 1
      %p122 = scmp.eq.s32.totalorder %s18, 1
      %p123 = scmp.ne.s32.totalorder %s118, %s120
      %p124 = scmp.eq.s32.totalorder %s18, 0
      %p125 = por %p123, %p124
      %p126 = scmp.ne.s32.totalorder %s118, %s120
      %p127 = scmp.eq.s32.totalorder %s23, 1
      %p128 = por %p126, %p127
      %p129 = scmp.ne.s32.totalorder %s120, %s121
      %p130 = scmp.eq.s32.totalorder %s23, 0
      %p131 = por %p129, %p130
      %p132 = scmp.ne.s32.totalorder %s120, %s121
      %p133 = scmp.eq.s32.totalorder %s24, 1
      %p134 = por %p132, %p133
      %p136 = scmp.ne.s32.totalorder %s121, %s135
      %p137 = scmp.eq.s32.totalorder %s24, 0
      %p138 = por %p136, %p137
      %s140 = sadd.s32 %s139, 1
      %p143 = scmp.eq.s32.totalorder %s18, 1
      %p144 = scmp.ne.s32.totalorder %s139, %s141
      %p145 = scmp.eq.s32.totalorder %s18, 0
      %p146 = por %p144, %p145
      %p147 = scmp.ne.s32.totalorder %s139, %s141
      %p148 = scmp.eq.s32.totalorder %s23, 1
      %p149 = por %p147, %p148
      %p150 = scmp.ne.s32.totalorder %s141, %s142
      %p151 = scmp.eq.s32.totalorder %s23, 0
      %p152 = por %p150, %p151
      %p153 = scmp.ne.s32.totalorder %s141, %s142
      %p154 = scmp.eq.s32.totalorder %s24, 1
      %p155 = por %p153, %p154
      %p157 = scmp.ne.s32.totalorder %s142, %s156
      %p158 = scmp.eq.s32.totalorder %s24, 0
      %p159 = por %p157, %p158
      %s161 = sadd.s32 %s160, 1
      %p164 = scmp.eq.s32.totalorder %s18, 1
      %p165 = scmp.ne.s32.totalorder %s160, %s162
      %p166 = scmp.eq.s32.totalorder %s18, 0
      %p167 = por %p165, %p166
      %p168 = scmp.ne.s32.totalorder %s160, %s162
      %p169 = scmp.eq.s32.totalorder %s23, 1
      %p170 = por %p168, %p169
      %p171 = scmp.ne.s32.totalorder %s162, %s163
      %p172 = scmp.eq.s32.totalorder %s23, 0
      %p173 = por %p171, %p172
      %p174 = scmp.ne.s32.totalorder %s162, %s163
      %p175 = scmp.eq.s32.totalorder %s24, 1
      %p176 = por %p174, %p175
      %p178 = scmp.ne.s32.totalorder %s163, %s177
      %p179 = scmp.eq.s32.totalorder %s24, 0
      %p180 = por %p178, %p179
      %s182 = sadd.s32 %s181, 1
      %p185 = scmp.eq.s32.totalorder %s18, 1
      %p186 = scmp.ne.s32.totalorder %s181, %s183
      %p187 = scmp.eq.s32.totalorder %s18, 0
      %p188 = por %p186, %p187
      %p189 = scmp.ne.s32.totalorder %s181, %s183
      %p190 = scmp.eq.s32.totalorder %s23, 1
      %p191 = por %p189, %p190
      %p192 = scmp.ne.s32.totalorder %s183, %s184
      %p193 = scmp.eq.s32.totalorder %s23, 0
      %p194 = por %p192, %p193
      %p195 = scmp.ne.s32.totalorder %s183, %s184
      %p196 = scmp.eq.s32.totalorder %s24, 1
      %p197 = por %p195, %p196
      %p199 = scmp.ne.s32.totalorder %s184, %s198
      %p200 = scmp.eq.s32.totalorder %s24, 0
      %p201 = por %p199, %p200
      %s203 = sadd.s32 %s202, 1
      %p206 = scmp.eq.s32.totalorder %s18, 1
      %p207 = scmp.ne.s32.totalorder %s202, %s204
      %p208 = scmp.eq.s32.totalorder %s18, 0
      %p209 = por %p207, %p208
      %p210 = scmp.ne.s32.totalorder %s202, %s204
      %p211 = scmp.eq.s32.totalorder %s23, 1
      %p212 = por %p210, %p211
      %p213 = scmp.ne.s32.totalorder %s204, %s205
      %p214 = scmp.eq.s32.totalorder %s23, 0
      %p215 = por %p213, %p214
      %p216 = scmp.ne.s32.totalorder %s204, %s205
      %p217 = scmp.eq.s32.totalorder %s24, 1
      %p218 = por %p216, %p217
      %p220 = scmp.ne.s32.totalorder %s205, %s219
      %p221 = scmp.eq.s32.totalorder %s24, 0
      %p222 = por %p220, %p221
      %s224 = sadd.s32 %s223, 1
      %p227 = scmp.eq.s32.totalorder %s18, 1
      %p228 = scmp.ne.s32.totalorder %s223, %s225
      %p229 = scmp.eq.s32.totalorder %s18, 0
      %p230 = por %p228, %p229
      %p231 = scmp.ne.s32.totalorder %s223, %s225
      %p232 = scmp.eq.s32.totalorder %s23, 1
      %p233 = por %p231, %p232
      %p234 = scmp.ne.s32.totalorder %s225, %s226
      %p235 = scmp.eq.s32.totalorder %s23, 0
      %p236 = por %p234, %p235
      %p237 = scmp.ne.s32.totalorder %s225, %s226
      %p238 = scmp.eq.s32.totalorder %s24, 1
      %p239 = por %p237, %p238
      %p241 = scmp.ne.s32.totalorder %s226, %s240
      %p242 = scmp.eq.s32.totalorder %s24, 0
      %p243 = por %p241, %p242
      %s244 = ssub.s32 %s25, %s37
      %p245 = scmp.eq.s32.totalorder %s244, 0
      %s247 = sadd.s32 %s246, 1
      %s248 = scalar_select %p245, %s246, %s247
      %p251 = pneg %p245
      %p252 = scmp.eq.s32.totalorder %s18, 1
      %p253 = por %p251, %p252
      %p254 = scmp.ne.s32.totalorder %s246, %s249
      %p255 = scmp.eq.s32.totalorder %s18, 0
      %p256 = por %p254, %p255
      %p257 = scmp.ne.s32.totalorder %s246, %s249
      %p258 = scmp.eq.s32.totalorder %s23, 1
      %p259 = por %p257, %p258
      %p260 = scmp.ne.s32.totalorder %s249, %s250
      %p261 = scmp.eq.s32.totalorder %s23, 0
      %p262 = por %p260, %p261
      %p263 = scmp.ne.s32.totalorder %s249, %s250
      %p264 = scmp.eq.s32.totalorder %s24, 1
      %p265 = por %p263, %p264
      %p267 = scmp.ne.s32.totalorder %s250, %s266
      %p268 = scmp.eq.s32.totalorder %s24, 0
      %p269 = por %p267, %p268
      %p270 = scmp.le.s32.totalorder 1, %s18
      %p271 = scmp.lt.s32.totalorder %s18, 3
      %p272 = pnand %p270, %p271
      %p273 = pneg %p272
      // Predicated region
      $region9: #{tpu_custom_call.1} parent=5 // pred_check
        _
      $region10: #{tpu_custom_call.1} parent=5 // pred_check_branch
        %275 = sbr.rel (%p272) target = $region12
      $region11: #{tpu_custom_call.1} parent=5 // pred_region
        %s276 = ssub.s32 %s18, 1
        // Predicated region
        $region13: #{tpu_custom_call.1} parent=11 // pred_check
          %p277 = pneg %p84
        $region14: #{tpu_custom_call.1} parent=11 // pred_check_branch
          %279 = sbr.rel (%p277) target = $region16
        $region15: #{tpu_custom_call.1} parent=11 // pred_region
          %s280 = smul.u32 16, %s28
          %p281 = scmp.lt.s32.totalorder %s280, 15
          %s282 = scalar_select %p281, %s280, 15
          %s283 = smul.addr %s282, 8
          %s284 = scalar_lea.vmem %s1, %s283
          %s285 = smul.u32 16, %s28
        $region16: #{tpu_custom_call.1} parent=11 // pred_fallthru
          _
        // Predicated region
        $region17: #{tpu_custom_call.1} parent=11 // pred_check
          %p286 = pneg %p131
        $region18: #{tpu_custom_call.1} parent=11 // pred_check_branch
          %288 = sbr.rel (%p286) target = $region20
        $region19: #{tpu_custom_call.1} parent=11 // pred_region
          _
        $region20: #{tpu_custom_call.1} parent=11 // pred_fallthru
          _
        // Predicated region
        $region21: #{tpu_custom_call.1} parent=11 // pred_check
          %p289 = pneg %p152
        $region22: #{tpu_custom_call.1} parent=11 // pred_check_branch
          %291 = sbr.rel (%p289) target = $region24
        $region23: #{tpu_custom_call.1} parent=11 // pred_region
          _
        $region24: #{tpu_custom_call.1} parent=11 // pred_fallthru
          _
        // Predicated region
        $region25: #{tpu_custom_call.1} parent=11 // pred_check
          %p292 = pneg %p173
        $region26: #{tpu_custom_call.1} parent=11 // pred_check_branch
          %294 = sbr.rel (%p292) target = $region28
        $region27: #{tpu_custom_call.1} parent=11 // pred_region
          _
        $region28: #{tpu_custom_call.1} parent=11 // pred_fallthru
          _
        // Predicated region
        $region29: #{tpu_custom_call.1} parent=11 // pred_check
          %p295 = pneg %p194
        $region30: #{tpu_custom_call.1} parent=11 // pred_check_branch
          %297 = sbr.rel (%p295) target = $region32
        $region31: #{tpu_custom_call.1} parent=11 // pred_region
          _
        $region32: #{tpu_custom_call.1} parent=11 // pred_fallthru
          _
        // Predicated region
        $region33: #{tpu_custom_call.1} parent=11 // pred_check
          %p298 = pneg %p215
        $region34: #{tpu_custom_call.1} parent=11 // pred_check_branch
          %300 = sbr.rel (%p298) target = $region36
        $region35: #{tpu_custom_call.1} parent=11 // pred_region
          _
        $region36: #{tpu_custom_call.1} parent=11 // pred_fallthru
          _
        // Predicated region
        $region37: #{tpu_custom_call.1} parent=11 // pred_check
          %p301 = pneg %p236
        $region38: #{tpu_custom_call.1} parent=11 // pred_check_branch
          %303 = sbr.rel (%p301) target = $region40
        $region39: #{tpu_custom_call.1} parent=11 // pred_region
          _
        $region40: #{tpu_custom_call.1} parent=11 // pred_fallthru
          _
      $region12: #{tpu_custom_call.1} parent=5 // pred_fallthru
        _
      %p304 = scmp.lt.s32.totalorder %s18, 2
      // Predicated region
      $region41: #{tpu_custom_call.1} parent=5 // pred_check
        %p305 = pneg %p304
      $region42: #{tpu_custom_call.1} parent=5 // pred_check_branch
        %307 = sbr.rel (%p305) target = $region44
      $region43: #{tpu_custom_call.1} parent=5 // pred_region
        // Predicated region
        $region45: #{tpu_custom_call.1} parent=43 // pred_check
          %p308 = pneg %p52
        $region46: #{tpu_custom_call.1} parent=43 // pred_check_branch
          %310 = sbr.rel (%p308) target = $region48
        $region47: #{tpu_custom_call.1} parent=43 // pred_region
          %s311 = smul.u32 4, %s25
          %p312 = scmp.lt.s32.totalorder %s311, 7
          %s313 = scalar_select %p312, %s311, 7
          %p314 = scmp.lt.s32.totalorder %s26, 0
          %s315 = scalar_select %p314, %s26, 0
          %s316 = sadd.s32 %s315, %s313
          %s317 = smul.addr %s316, 8
          %s318 = scalar_lea.vmem %s0, %s317
          %s319 = smul.u32 4, %s25
        $region48: #{tpu_custom_call.1} parent=43 // pred_fallthru
          _
        // Predicated region
        $region49: #{tpu_custom_call.1} parent=43 // pred_check
          %p320 = pneg %p104
        $region50: #{tpu_custom_call.1} parent=43 // pred_check_branch
          %322 = sbr.rel (%p320) target = $region52
        $region51: #{tpu_custom_call.1} parent=43 // pred_region
          %s323 = smul.u32 4, %s25
          %p324 = scmp.lt.s32.totalorder %s323, 7
          %s325 = scalar_select %p324, %s323, 7
          %s326 = smul.addr %s325, 8
          %s327 = scalar_lea.vmem %s2, %s326
          %s328 = smul.u32 4, %s25
        $region52: #{tpu_custom_call.1} parent=43 // pred_fallthru
          _
      $region44: #{tpu_custom_call.1} parent=5 // pred_fallthru
        _
      %p329 = scmp.le.s32.totalorder 1, %s18
      %p330 = scmp.lt.s32.totalorder %s18, 3
      %p331 = pnand %p329, %p330
      %p332 = pneg %p331
      // Predicated region
      $region53: #{tpu_custom_call.1} parent=5 // pred_check
        _
      $region54: #{tpu_custom_call.1} parent=5 // pred_check_branch
        %334 = sbr.rel (%p331) target = $region56
      $region55: #{tpu_custom_call.1} parent=5 // pred_region
        %s335 = ssub.s32 %s18, 1
        %s336 = smul.u32 4, %s27
        %p337 = scmp.lt.s32.totalorder %s336, 7
        %s338 = scalar_select %p337, %s336, 7
        %p339 = scmp.lt.s32.totalorder %s28, 0
        %s340 = scalar_select %p339, %s28, 0
        %s341 = sadd.s32 %s340, %s338
        %s342 = smul.addr %s341, 8
        %s343 = scalar_lea.vmem %s0, %s342
        %p344 = pneg %p58
        %p345 = pneg %p55
        %s346 = smul.u32 16, %s28
        %p347 = scmp.lt.s32.totalorder %s346, 15
        %s348 = scalar_select %p347, %s346, 15
        %s349 = smul.addr %s348, 8
        %s350 = scalar_lea.vmem %s1, %s349
        %p351 = pneg %p84
        %p352 = pneg %p81
        %s353 = smul.u32 4, %s27
        %p354 = scmp.lt.s32.totalorder %s353, 7
        %s355 = scalar_select %p354, %s353, 7
        %s356 = smul.addr %s355, 8
        %s357 = scalar_lea.vmem %s2, %s356
        %p358 = pneg %p110
        %p359 = pneg %p107
        %p360 = pneg %p131
        %p361 = pneg %p128
        %p362 = pneg %p152
        %p363 = pneg %p149
        %p364 = pneg %p173
        %p365 = pneg %p170
        %p366 = pneg %p194
        %p367 = pneg %p191
        %p368 = pneg %p215
        %p369 = pneg %p212
        %p370 = pneg %p236
        %p371 = pneg %p233
        %p372 = pneg %p262
        %p373 = pneg %p259
        %s374 = sand.u32 %s249, 1
        %s375 = scalar_lea.sflag [#allocation4], %s374
        %s376 = sand.u32 %s249, 1
        %s377 = smul.addr %s376, 32
        %s378 = scalar_lea.vmem [#allocation3], %s377
        %s379 = smul.u32 4, %s27
        %p380 = scmp.lt.s32.totalorder %s379, 7
        %s381 = scalar_select %p380, %s379, 7
        %p382 = scmp.lt.s32.totalorder %s28, 0
        %s383 = scalar_select %p382, %s28, 0
        %s384 = sadd.s32 %s383, %s381
        %s385 = smul.addr %s384, 8
        %s386 = scalar_lea.vmem %s0, %s385
        %s387 = smul.u32 4, %s27
        %s388 = smul.u32 16, %s28
        %p389 = scmp.lt.s32.totalorder %s388, 15
        %s390 = scalar_select %p389, %s388, 15
        %s391 = smul.addr %s390, 8
        %s392 = scalar_lea.vmem %s1, %s391
        %s393 = smul.u32 16, %s28
        %s394 = smul.u32 4, %s27
        %p395 = scmp.lt.s32.totalorder %s394, 7
        %s396 = scalar_select %p395, %s394, 7
        %s397 = smul.addr %s396, 8
        %s398 = scalar_lea.vmem %s2, %s397
        %s399 = smul.u32 4, %s27
        %s400 = smul.u32 4, %s27
        %p401 = scmp.eq.s32.totalorder %s28, 0
        // Predicated region
        $region57: #{tpu_custom_call.1} parent=55 // pred_check
          %p402 = pneg %p401
        $region58: #{tpu_custom_call.1} parent=55 // pred_check_branch
          %404 = sbr.rel (%p402) target = $region60
        $region59: #{tpu_custom_call.1} parent=55 // pred_region
          %vm405 = vcmask 269312
          %406 = vst.msk [vmem:[#allocation2] sm:$0xff] %vm405, 0.0
          %407 = vst.msk [vmem:[#allocation2 + $0x8] sm:$0xff] %vm405, 0.0
          %408 = vst.msk [vmem:[#allocation2 + $0x10] sm:$0xff] %vm405, 0.0
          %409 = vst.msk [vmem:[#allocation2 + $0x18] sm:$0xff] %vm405, 0.0
        $region60: #{tpu_custom_call.1} parent=55 // pred_fallthru
          _
        %v410 = vld [vmem:[#allocation2] sm:$0xff]
        %v411 = vld [vmem:[#allocation2 + $0x8] sm:$0xff]
        %v412 = vld [vmem:[#allocation2 + $0x10] sm:$0xff]
        %v413 = vld [vmem:[#allocation2 + $0x18] sm:$0xff]
        %v414 = vld [vmem:[%s386] sm:$0xff]
        %v415 = vld [vmem:[%s386 + $0x8] sm:$0xff]
        %v416 = vld [vmem:[%s386 + $0x10] sm:$0xff]
        %v417 = vld [vmem:[%s386 + $0x18] sm:$0xff]
        %v418 = vld [vmem:[%s392] sm:$0xff]
        %v419 = vld [vmem:[%s392 + $0x8] sm:$0xff]
        %v420 = vld [vmem:[%s392 + $0x10] sm:$0xff]
        %v421 = vld [vmem:[%s392 + $0x18] sm:$0xff]
        %v422 = vld [vmem:[%s392 + $0x20] sm:$0xff]
        %v423 = vld [vmem:[%s392 + $0x28] sm:$0xff]
        %v424 = vld [vmem:[%s392 + $0x30] sm:$0xff]
        %v425 = vld [vmem:[%s392 + $0x38] sm:$0xff]
        %v426 = vld [vmem:[%s392 + $0x40] sm:$0xff]
        %v427 = vld [vmem:[%s392 + $0x48] sm:$0xff]
        %v428 = vld [vmem:[%s392 + $0x50] sm:$0xff]
        %v429 = vld [vmem:[%s392 + $0x58] sm:$0xff]
        %v430 = vld [vmem:[%s392 + $0x60] sm:$0xff]
        %v431 = vld [vmem:[%s392 + $0x68] sm:$0xff]
        %v432 = vld [vmem:[%s392 + $0x70] sm:$0xff]
        %v433 = vld [vmem:[%s392 + $0x78] sm:$0xff]
        %434 = vmatprep.subr.mxu0 0.0
        %435 = vmatpush1.msra.mxu0 %v433
        %436 = vmatprep.subr.mxu0 0.0
        %437 = vmatpush1.msra.mxu0 %v432
        %438 = vmatprep.subr.mxu0 0.0
        %439 = vmatpush1.msra.mxu0 %v431
        %440 = vmatprep.subr.mxu0 0.0
        %441 = vmatpush1.msra.mxu0 %v430
        %442 = vmatprep.subr.mxu0 0.0
        %443 = vmatpush1.msra.mxu0 %v429
        %444 = vmatprep.subr.mxu0 0.0
        %445 = vmatpush1.msra.mxu0 %v428
        %446 = vmatprep.subr.mxu0 0.0
        %447 = vmatpush1.msra.mxu0 %v427
        %448 = vmatprep.subr.mxu0 0.0
        %449 = vmatpush1.msra.mxu0 %v426
        %450 = vmatprep.subr.mxu0 0.0
        %451 = vmatpush1.msra.mxu0 %v425
        %452 = vmatprep.subr.mxu0 0.0
        %453 = vmatpush1.msra.mxu0 %v424
        %454 = vmatprep.subr.mxu0 0.0
        %455 = vmatpush1.msra.mxu0 %v423
        %456 = vmatprep.subr.mxu0 0.0
        %457 = vmatpush1.msra.mxu0 %v422
        %458 = vmatprep.subr.mxu0 0.0
        %459 = vmatpush1.msra.mxu0 %v421
        %460 = vmatprep.subr.mxu0 0.0
        %461 = vmatpush1.msra.mxu0 %v420
        %462 = vmatprep.subr.mxu0 0.0
        %463 = vmatpush1.msra.mxu0 %v419
        %464 = vmatprep.subr.mxu0 0.0
        %465 = vmatpush1.msra.mxu0 %v418
        %466 = vmatprep.subr.mxu0 0.0
        %467 = vmatpush2.msra.mxu0 0.0
        %468 = vmatprep.subr.mxu0 0.0
        %469 = vmatpush2.msra.mxu0 0.0
        %470 = vmatprep.subr.mxu0 0.0
        %471 = vmatpush2.msra.mxu0 0.0
        %472 = vmatprep.subr.mxu0 0.0
        %473 = vmatpush2.msra.mxu0 0.0
        %474 = vmatprep.subr.mxu0 0.0
        %475 = vmatpush2.msra.mxu0 0.0
        %476 = vmatprep.subr.mxu0 0.0
        %477 = vmatpush2.msra.mxu0 0.0
        %478 = vmatprep.subr.mxu0 0.0
        %479 = vmatpush2.msra.mxu0 0.0
        %480 = vmatprep.subr.mxu0 0.0
        %481 = vmatpush2.msra.mxu0 0.0
        %482 = vmatprep.subr.mxu0 0.0
        %483 = vmatpush2.msra.mxu0 0.0
        %484 = vmatprep.subr.mxu0 0.0
        %485 = vmatpush2.msra.mxu0 0.0
        %486 = vmatprep.subr.mxu0 0.0
        %487 = vmatpush2.msra.mxu0 0.0
        %488 = vmatprep.subr.mxu0 0.0
        %489 = vmatpush2.msra.mxu0 0.0
        %490 = vmatprep.subr.mxu0 0.0
        %491 = vmatpush2.msra.mxu0 0.0
        %492 = vmatprep.subr.mxu0 0.0
        %493 = vmatpush2.msra.mxu0 0.0
        %494 = vmatprep.subr.mxu0 0.0
        %495 = vmatpush2.msra.mxu0 0.0
        %496 = vmatprep.subr.mxu0 0.0
        %497 = vmatpush2.msra.mxu0 0.0
        %498 = vmatprep.mubr.f32.mxu0 0.0
        %499 = vmatmul.mubr.f32.gmra.mxu0 %v414
        %v500 = vpop.f32.mrf.mxu0
        %v501 = vadd.f32 0.0, %v500
        %v502 = vpop.f32.mrf.mxu0
        %503 = vmatprep.mubr.f32.mxu0 0.0
        %504 = vmatmul.mubr.f32.gmra.mxu0 %v415
        %v505 = vpop.f32.mrf.mxu0
        %v506 = vadd.f32 0.0, %v505
        %v507 = vpop.f32.mrf.mxu0
        %508 = vmatprep.mubr.f32.mxu0 0.0
        %509 = vmatmul.mubr.f32.gmra.mxu0 %v416
        %v510 = vpop.f32.mrf.mxu0
        %v511 = vadd.f32 0.0, %v510
        %v512 = vpop.f32.mrf.mxu0
        %513 = vmatprep.mubr.f32.mxu0 0.0
        %514 = vmatmul.mubr.f32.gmra.mxu0 %v417
        %v515 = vpop.f32.mrf.mxu0
        %v516 = vadd.f32 0.0, %v515
        %v517 = vpop.f32.mrf.mxu0
        %518 = vdwg.mxu0
        %v519 = vadd.f32 %v410, %v501
        %v520 = vadd.f32 %v411, %v506
        %v521 = vadd.f32 %v412, %v511
        %v522 = vadd.f32 %v413, %v516
        %vm523 = vcmask 269312
        %524 = vst.msk [vmem:[#allocation2] sm:$0xff] %vm523, %v519
        %525 = vst.msk [vmem:[#allocation2 + $0x8] sm:$0xff] %vm523, %v520
        %526 = vst.msk [vmem:[#allocation2 + $0x10] sm:$0xff] %vm523, %v521
        %527 = vst.msk [vmem:[#allocation2 + $0x18] sm:$0xff] %vm523, %v522
        // Predicated region
        $region61: #{tpu_custom_call.1} parent=55 // pred_check
          %p528 = pneg %p401
        $region62: #{tpu_custom_call.1} parent=55 // pred_check_branch
          %530 = sbr.rel (%p528) target = $region64
        $region63: #{tpu_custom_call.1} parent=55 // pred_region
          %v531 = vld [vmem:[%s398] sm:$0xff]
          %v532 = vld [vmem:[%s398 + $0x8] sm:$0xff]
          %v533 = vld [vmem:[%s398 + $0x10] sm:$0xff]
          %v534 = vld [vmem:[%s398 + $0x18] sm:$0xff]
          %v535 = vld [vmem:[#allocation2] sm:$0xff]
          %v536 = vld [vmem:[#allocation2 + $0x8] sm:$0xff]
          %v537 = vld [vmem:[#allocation2 + $0x10] sm:$0xff]
          %v538 = vld [vmem:[#allocation2 + $0x18] sm:$0xff]
          %v539 = vmax.f32 %v535, 1e-12
          %v540 = vmax.f32 %v536, 1e-12
          %v541 = vmax.f32 %v537, 1e-12
          %v542 = vmax.f32 %v538, 1e-12
          %v543 = vrcp.pop %v539
          %v544 = vrcp.pop %v540
          %v545 = vrcp.pop %v541
          %v546 = vrcp.pop %v542
          %548 = vset.pattern.permute.xlu0 32
          %549 = vperm.xlu0 %548, %v543
          %v550 = vpop.permute.xlu0 %549
          %553 = vset.pattern.permute.xlu0 32
          %554 = vperm.xlu0 %553, %v544
          %v555 = vpop.permute.xlu0 %554
          %558 = vset.pattern.permute.xlu0 32
          %559 = vperm.xlu0 %558, %v545
          %v560 = vpop.permute.xlu0 %559
          %563 = vset.pattern.permute.xlu0 32
          %564 = vperm.xlu0 %563, %v546
          %v565 = vpop.permute.xlu0 %564
          %v567 = vmul.f32 %v535, %v550
          %v568 = vmul.f32 %v536, %v555
          %v569 = vmul.f32 %v537, %v560
          %v570 = vmul.f32 %v538, %v565
          %v571 = vld [vmem:[%s3] sm:$0xff]
          %v572 = vld [vmem:[%s3 + $0x8] sm:$0xff]
          %v573 = vld [vmem:[%s3 + $0x10] sm:$0xff]
          %v574 = vld [vmem:[%s3 + $0x18] sm:$0xff]
          %v575 = vld [vmem:[%s4] sm:$0xff]
          %v576 = vld [vmem:[%s4 + $0x8] sm:$0xff]
          %v577 = vld [vmem:[%s4 + $0x10] sm:$0xff]
          %v578 = vld [vmem:[%s4 + $0x18] sm:$0xff]
          %vm579 = vcmask 261120
          %v581 = vsel %vm579, %v567, 0
          %v584 = vsel %vm579, %v568, 0
          %v587 = vsel %vm579, %v569, 0
          %v590 = vsel %vm579, %v570, 0
          %592 = vmatprep.subr.mxu0 0.0
          %593 = vmatpush1.msra.mxu0 0.0
          %594 = vmatprep.subr.mxu0 0.0
          %595 = vmatpush1.msra.mxu0 0.0
          %596 = vmatprep.subr.mxu0 0.0
          %597 = vmatpush1.msra.mxu0 0.0
          %598 = vmatprep.subr.mxu0 0.0
          %599 = vmatpush1.msra.mxu0 0.0
          %600 = vmatprep.subr.mxu0 0.0
          %601 = vmatpush1.msra.mxu0 0.0
          %602 = vmatprep.subr.mxu0 0.0
          %603 = vmatpush1.msra.mxu0 0.0
          %604 = vmatprep.subr.mxu0 0.0
          %605 = vmatpush1.msra.mxu0 0.0
          %606 = vmatprep.subr.mxu0 0.0
          %607 = vmatpush1.msra.mxu0 0.0
          %608 = vmatprep.subr.mxu0 0.0
          %609 = vmatpush1.msra.mxu0 0.0
          %610 = vmatprep.subr.mxu0 0.0
          %611 = vmatpush1.msra.mxu0 0.0
          %612 = vmatprep.subr.mxu0 0.0
          %613 = vmatpush1.msra.mxu0 0.0
          %614 = vmatprep.subr.mxu0 0.0
          %615 = vmatpush1.msra.mxu0 0.0
          %616 = vmatprep.subr.mxu0 0.0
          %617 = vmatpush1.msra.mxu0 %v578
          %618 = vmatprep.subr.mxu0 0.0
          %619 = vmatpush1.msra.mxu0 %v577
          %620 = vmatprep.subr.mxu0 0.0
          %621 = vmatpush1.msra.mxu0 %v576
          %622 = vmatprep.subr.mxu0 0.0
          %623 = vmatpush1.msra.mxu0 %v575
          %624 = vmatprep.subr.mxu0 0.0
          %625 = vmatpush2.msra.mxu0 0.0
          %626 = vmatprep.subr.mxu0 0.0
          %627 = vmatpush2.msra.mxu0 0.0
          %628 = vmatprep.subr.mxu0 0.0
          %629 = vmatpush2.msra.mxu0 0.0
          %630 = vmatprep.subr.mxu0 0.0
          %631 = vmatpush2.msra.mxu0 0.0
          %632 = vmatprep.subr.mxu0 0.0
          %633 = vmatpush2.msra.mxu0 0.0
          %634 = vmatprep.subr.mxu0 0.0
          %635 = vmatpush2.msra.mxu0 0.0
          %636 = vmatprep.subr.mxu0 0.0
          %637 = vmatpush2.msra.mxu0 0.0
          %638 = vmatprep.subr.mxu0 0.0
          %639 = vmatpush2.msra.mxu0 0.0
          %640 = vmatprep.subr.mxu0 0.0
          %641 = vmatpush2.msra.mxu0 0.0
          %642 = vmatprep.subr.mxu0 0.0
          %643 = vmatpush2.msra.mxu0 0.0
          %644 = vmatprep.subr.mxu0 0.0
          %645 = vmatpush2.msra.mxu0 0.0
          %646 = vmatprep.subr.mxu0 0.0
          %647 = vmatpush2.msra.mxu0 0.0
          %648 = vmatprep.subr.mxu0 0.0
          %649 = vmatpush2.msra.mxu0 0.0
          %650 = vmatprep.subr.mxu0 0.0
          %651 = vmatpush2.msra.mxu0 0.0
          %652 = vmatprep.subr.mxu0 0.0
          %653 = vmatpush2.msra.mxu0 0.0
          %654 = vmatprep.subr.mxu0 0.0
          %655 = vmatpush2.msra.mxu0 0.0
          %656 = vmatprep.mubr.f32.mxu0 0.0
          %657 = vmatmul.mubr.f32.gmra.mxu0 %v581
          %v658 = vpop.f32.mrf.mxu0
          %v659 = vadd.f32 0.0, %v658
          %v660 = vpop.f32.mrf.mxu0
          %661 = vmatprep.mubr.f32.mxu0 0.0
          %662 = vmatmul.mubr.f32.gmra.mxu0 %v584
          %v663 = vpop.f32.mrf.mxu0
          %v664 = vadd.f32 0.0, %v663
          %v665 = vpop.f32.mrf.mxu0
          %666 = vmatprep.mubr.f32.mxu0 0.0
          %667 = vmatmul.mubr.f32.gmra.mxu0 %v587
          %v668 = vpop.f32.mrf.mxu0
          %v669 = vadd.f32 0.0, %v668
          %v670 = vpop.f32.mrf.mxu0
          %671 = vmatprep.mubr.f32.mxu0 0.0
          %672 = vmatmul.mubr.f32.gmra.mxu0 %v590
          %v673 = vpop.f32.mrf.mxu0
          %v674 = vadd.f32 0.0, %v673
          %v675 = vpop.f32.mrf.mxu0
          %676 = vdwg.mxu0
          %v678 = vsel %vm579, %v531, 0
          %v681 = vsel %vm579, %v532, 0
          %v684 = vsel %vm579, %v533, 0
          %v687 = vsel %vm579, %v534, 0
          %689 = vmatprep.subr.mxu0 0.0
          %690 = vmatpush1.msra.mxu0 0.0
          %691 = vmatprep.subr.mxu0 0.0
          %692 = vmatpush1.msra.mxu0 0.0
          %693 = vmatprep.subr.mxu0 0.0
          %694 = vmatpush1.msra.mxu0 0.0
          %695 = vmatprep.subr.mxu0 0.0
          %696 = vmatpush1.msra.mxu0 0.0
          %697 = vmatprep.subr.mxu0 0.0
          %698 = vmatpush1.msra.mxu0 0.0
          %699 = vmatprep.subr.mxu0 0.0
          %700 = vmatpush1.msra.mxu0 0.0
          %701 = vmatprep.subr.mxu0 0.0
          %702 = vmatpush1.msra.mxu0 0.0
          %703 = vmatprep.subr.mxu0 0.0
          %704 = vmatpush1.msra.mxu0 0.0
          %705 = vmatprep.subr.mxu0 0.0
          %706 = vmatpush1.msra.mxu0 0.0
          %707 = vmatprep.subr.mxu0 0.0
          %708 = vmatpush1.msra.mxu0 0.0
          %709 = vmatprep.subr.mxu0 0.0
          %710 = vmatpush1.msra.mxu0 0.0
          %711 = vmatprep.subr.mxu0 0.0
          %712 = vmatpush1.msra.mxu0 0.0
          %713 = vmatprep.subr.mxu0 0.0
          %714 = vmatpush1.msra.mxu0 %v574
          %715 = vmatprep.subr.mxu0 0.0
          %716 = vmatpush1.msra.mxu0 %v573
          %717 = vmatprep.subr.mxu0 0.0
          %718 = vmatpush1.msra.mxu0 %v572
          %719 = vmatprep.subr.mxu0 0.0
          %720 = vmatpush1.msra.mxu0 %v571
          %721 = vmatprep.subr.mxu0 0.0
          %722 = vmatpush2.msra.mxu0 0.0
          %723 = vmatprep.subr.mxu0 0.0
          %724 = vmatpush2.msra.mxu0 0.0
          %725 = vmatprep.subr.mxu0 0.0
          %726 = vmatpush2.msra.mxu0 0.0
          %727 = vmatprep.subr.mxu0 0.0
          %728 = vmatpush2.msra.mxu0 0.0
          %729 = vmatprep.subr.mxu0 0.0
          %730 = vmatpush2.msra.mxu0 0.0
          %731 = vmatprep.subr.mxu0 0.0
          %732 = vmatpush2.msra.mxu0 0.0
          %733 = vmatprep.subr.mxu0 0.0
          %734 = vmatpush2.msra.mxu0 0.0
          %735 = vmatprep.subr.mxu0 0.0
          %736 = vmatpush2.msra.mxu0 0.0
          %737 = vmatprep.subr.mxu0 0.0
          %738 = vmatpush2.msra.mxu0 0.0
          %739 = vmatprep.subr.mxu0 0.0
          %740 = vmatpush2.msra.mxu0 0.0
          %741 = vmatprep.subr.mxu0 0.0
          %742 = vmatpush2.msra.mxu0 0.0
          %743 = vmatprep.subr.mxu0 0.0
          %744 = vmatpush2.msra.mxu0 0.0
          %745 = vmatprep.subr.mxu0 0.0
          %746 = vmatpush2.msra.mxu0 0.0
          %747 = vmatprep.subr.mxu0 0.0
          %748 = vmatpush2.msra.mxu0 0.0
          %749 = vmatprep.subr.mxu0 0.0
          %750 = vmatpush2.msra.mxu0 0.0
          %751 = vmatprep.subr.mxu0 0.0
          %752 = vmatpush2.msra.mxu0 0.0
          %753 = vmatprep.mubr.f32.mxu0 0.0
          %754 = vmatmul.mubr.f32.gmra.mxu0 %v678
          %v755 = vpop.f32.mrf.mxu0
          %v756 = vadd.f32 %v659, %v755
          %v757 = vpop.f32.mrf.mxu0
          %758 = vmatprep.mubr.f32.mxu0 0.0
          %759 = vmatmul.mubr.f32.gmra.mxu0 %v681
          %v760 = vpop.f32.mrf.mxu0
          %v761 = vadd.f32 %v664, %v760
          %v762 = vpop.f32.mrf.mxu0
          %763 = vmatprep.mubr.f32.mxu0 0.0
          %764 = vmatmul.mubr.f32.gmra.mxu0 %v684
          %v765 = vpop.f32.mrf.mxu0
          %v766 = vadd.f32 %v669, %v765
          %v767 = vpop.f32.mrf.mxu0
          %768 = vmatprep.mubr.f32.mxu0 0.0
          %769 = vmatmul.mubr.f32.gmra.mxu0 %v687
          %v770 = vpop.f32.mrf.mxu0
          %v771 = vadd.f32 %v674, %v770
          %v772 = vpop.f32.mrf.mxu0
          %773 = vdwg.mxu0
          %vm774 = vcmp.gt.f32.partialorder %v756, 0.0
          %vm775 = vcmp.gt.f32.partialorder %v761, 0.0
          %vm776 = vcmp.gt.f32.partialorder %v766, 0.0
          %vm777 = vcmp.gt.f32.partialorder %v771, 0.0
          %v778 = vmul.f32 %v756, 0.2
          %v779 = vmul.f32 %v761, 0.2
          %v780 = vmul.f32 %v766, 0.2
          %v781 = vmul.f32 %v771, 0.2
          %v782 = vsel %vm774, %v756, %v778
          %v783 = vsel %vm775, %v761, %v779
          %v784 = vsel %vm776, %v766, %v780
          %v785 = vsel %vm777, %v771, %v781
          %v786 = vadd.f32 %v782, 1.0
          %v787 = vadd.f32 %v783, 1.0
          %v788 = vadd.f32 %v784, 1.0
          %v789 = vadd.f32 %v785, 1.0
          %v790 = vld [vmem:[%s5] sm:$0xff]
          %v791 = vld [vmem:[%s5 + $0x8] sm:$0xff]
          %v792 = vld [vmem:[%s5 + $0x10] sm:$0xff]
          %v793 = vld [vmem:[%s5 + $0x18] sm:$0xff]
          %v794 = vld [vmem:[%s6] sm:$0xff]
          %v795 = vld [vmem:[%s6 + $0x8] sm:$0xff]
          %v796 = vld [vmem:[%s6 + $0x10] sm:$0xff]
          %v797 = vld [vmem:[%s6 + $0x18] sm:$0xff]
          %798 = vmatprep.subr.mxu0 0.0
          %799 = vmatpush1.msra.mxu0 0.0
          %800 = vmatprep.subr.mxu0 0.0
          %801 = vmatpush1.msra.mxu0 0.0
          %802 = vmatprep.subr.mxu0 0.0
          %803 = vmatpush1.msra.mxu0 0.0
          %804 = vmatprep.subr.mxu0 0.0
          %805 = vmatpush1.msra.mxu0 0.0
          %806 = vmatprep.subr.mxu0 0.0
          %807 = vmatpush1.msra.mxu0 0.0
          %808 = vmatprep.subr.mxu0 0.0
          %809 = vmatpush1.msra.mxu0 0.0
          %810 = vmatprep.subr.mxu0 0.0
          %811 = vmatpush1.msra.mxu0 0.0
          %812 = vmatprep.subr.mxu0 0.0
          %813 = vmatpush1.msra.mxu0 0.0
          %814 = vmatprep.subr.mxu0 0.0
          %815 = vmatpush1.msra.mxu0 0.0
          %816 = vmatprep.subr.mxu0 0.0
          %817 = vmatpush1.msra.mxu0 0.0
          %818 = vmatprep.subr.mxu0 0.0
          %819 = vmatpush1.msra.mxu0 0.0
          %820 = vmatprep.subr.mxu0 0.0
          %821 = vmatpush1.msra.mxu0 0.0
          %822 = vmatprep.subr.mxu0 0.0
          %823 = vmatpush1.msra.mxu0 %v797
          %824 = vmatprep.subr.mxu0 0.0
          %825 = vmatpush1.msra.mxu0 %v796
          %826 = vmatprep.subr.mxu0 0.0
          %827 = vmatpush1.msra.mxu0 %v795
          %828 = vmatprep.subr.mxu0 0.0
          %829 = vmatpush1.msra.mxu0 %v794
          %830 = vmatprep.subr.mxu0 0.0
          %831 = vmatpush2.msra.mxu0 0.0
          %832 = vmatprep.subr.mxu0 0.0
          %833 = vmatpush2.msra.mxu0 0.0
          %834 = vmatprep.subr.mxu0 0.0
          %835 = vmatpush2.msra.mxu0 0.0
          %836 = vmatprep.subr.mxu0 0.0
          %837 = vmatpush2.msra.mxu0 0.0
          %838 = vmatprep.subr.mxu0 0.0
          %839 = vmatpush2.msra.mxu0 0.0
          %840 = vmatprep.subr.mxu0 0.0
          %841 = vmatpush2.msra.mxu0 0.0
          %842 = vmatprep.subr.mxu0 0.0
          %843 = vmatpush2.msra.mxu0 0.0
          %844 = vmatprep.subr.mxu0 0.0
          %845 = vmatpush2.msra.mxu0 0.0
          %846 = vmatprep.subr.mxu0 0.0
          %847 = vmatpush2.msra.mxu0 0.0
          %848 = vmatprep.subr.mxu0 0.0
          %849 = vmatpush2.msra.mxu0 0.0
          %850 = vmatprep.subr.mxu0 0.0
          %851 = vmatpush2.msra.mxu0 0.0
          %852 = vmatprep.subr.mxu0 0.0
          %853 = vmatpush2.msra.mxu0 0.0
          %854 = vmatprep.subr.mxu0 0.0
          %855 = vmatpush2.msra.mxu0 0.0
          %856 = vmatprep.subr.mxu0 0.0
          %857 = vmatpush2.msra.mxu0 0.0
          %858 = vmatprep.subr.mxu0 0.0
          %859 = vmatpush2.msra.mxu0 0.0
          %860 = vmatprep.subr.mxu0 0.0
          %861 = vmatpush2.msra.mxu0 0.0
          %862 = vmatprep.mubr.f32.mxu0 0.0
          %863 = vmatmul.mubr.f32.gmra.mxu0 %v581
          %v864 = vpop.f32.mrf.mxu0
          %v865 = vadd.f32 0.0, %v864
          %v866 = vpop.f32.mrf.mxu0
          %867 = vmatprep.mubr.f32.mxu0 0.0
          %868 = vmatmul.mubr.f32.gmra.mxu0 %v584
          %v869 = vpop.f32.mrf.mxu0
          %v870 = vadd.f32 0.0, %v869
          %v871 = vpop.f32.mrf.mxu0
          %872 = vmatprep.mubr.f32.mxu0 0.0
          %873 = vmatmul.mubr.f32.gmra.mxu0 %v587
          %v874 = vpop.f32.mrf.mxu0
          %v875 = vadd.f32 0.0, %v874
          %v876 = vpop.f32.mrf.mxu0
          %877 = vmatprep.mubr.f32.mxu0 0.0
          %878 = vmatmul.mubr.f32.gmra.mxu0 %v590
          %v879 = vpop.f32.mrf.mxu0
          %v880 = vadd.f32 0.0, %v879
          %v881 = vpop.f32.mrf.mxu0
          %882 = vdwg.mxu0
          %883 = vmatprep.subr.mxu0 0.0
          %884 = vmatpush1.msra.mxu0 0.0
          %885 = vmatprep.subr.mxu0 0.0
          %886 = vmatpush1.msra.mxu0 0.0
          %887 = vmatprep.subr.mxu0 0.0
          %888 = vmatpush1.msra.mxu0 0.0
          %889 = vmatprep.subr.mxu0 0.0
          %890 = vmatpush1.msra.mxu0 0.0
          %891 = vmatprep.subr.mxu0 0.0
          %892 = vmatpush1.msra.mxu0 0.0
          %893 = vmatprep.subr.mxu0 0.0
          %894 = vmatpush1.msra.mxu0 0.0
          %895 = vmatprep.subr.mxu0 0.0
          %896 = vmatpush1.msra.mxu0 0.0
          %897 = vmatprep.subr.mxu0 0.0
          %898 = vmatpush1.msra.mxu0 0.0
          %899 = vmatprep.subr.mxu0 0.0
          %900 = vmatpush1.msra.mxu0 0.0
          %901 = vmatprep.subr.mxu0 0.0
          %902 = vmatpush1.msra.mxu0 0.0
          %903 = vmatprep.subr.mxu0 0.0
          %904 = vmatpush1.msra.mxu0 0.0
          %905 = vmatprep.subr.mxu0 0.0
          %906 = vmatpush1.msra.mxu0 0.0
          %907 = vmatprep.subr.mxu0 0.0
          %908 = vmatpush1.msra.mxu0 %v793
          %909 = vmatprep.subr.mxu0 0.0
          %910 = vmatpush1.msra.mxu0 %v792
          %911 = vmatprep.subr.mxu0 0.0
          %912 = vmatpush1.msra.mxu0 %v791
          %913 = vmatprep.subr.mxu0 0.0
          %914 = vmatpush1.msra.mxu0 %v790
          %915 = vmatprep.subr.mxu0 0.0
          %916 = vmatpush2.msra.mxu0 0.0
          %917 = vmatprep.subr.mxu0 0.0
          %918 = vmatpush2.msra.mxu0 0.0
          %919 = vmatprep.subr.mxu0 0.0
          %920 = vmatpush2.msra.mxu0 0.0
          %921 = vmatprep.subr.mxu0 0.0
          %922 = vmatpush2.msra.mxu0 0.0
          %923 = vmatprep.subr.mxu0 0.0
          %924 = vmatpush2.msra.mxu0 0.0
          %925 = vmatprep.subr.mxu0 0.0
          %926 = vmatpush2.msra.mxu0 0.0
          %927 = vmatprep.subr.mxu0 0.0
          %928 = vmatpush2.msra.mxu0 0.0
          %929 = vmatprep.subr.mxu0 0.0
          %930 = vmatpush2.msra.mxu0 0.0
          %931 = vmatprep.subr.mxu0 0.0
          %932 = vmatpush2.msra.mxu0 0.0
          %933 = vmatprep.subr.mxu0 0.0
          %934 = vmatpush2.msra.mxu0 0.0
          %935 = vmatprep.subr.mxu0 0.0
          %936 = vmatpush2.msra.mxu0 0.0
          %937 = vmatprep.subr.mxu0 0.0
          %938 = vmatpush2.msra.mxu0 0.0
          %939 = vmatprep.subr.mxu0 0.0
          %940 = vmatpush2.msra.mxu0 0.0
          %941 = vmatprep.subr.mxu0 0.0
          %942 = vmatpush2.msra.mxu0 0.0
          %943 = vmatprep.subr.mxu0 0.0
          %944 = vmatpush2.msra.mxu0 0.0
          %945 = vmatprep.subr.mxu0 0.0
          %946 = vmatpush2.msra.mxu0 0.0
          %947 = vmatprep.mubr.f32.mxu0 0.0
          %948 = vmatmul.mubr.f32.gmra.mxu0 %v678
          %v949 = vpop.f32.mrf.mxu0
          %v950 = vadd.f32 %v865, %v949
          %v951 = vpop.f32.mrf.mxu0
          %952 = vmatprep.mubr.f32.mxu0 0.0
          %953 = vmatmul.mubr.f32.gmra.mxu0 %v681
          %v954 = vpop.f32.mrf.mxu0
          %v955 = vadd.f32 %v870, %v954
          %v956 = vpop.f32.mrf.mxu0
          %957 = vmatprep.mubr.f32.mxu0 0.0
          %958 = vmatmul.mubr.f32.gmra.mxu0 %v684
          %v959 = vpop.f32.mrf.mxu0
          %v960 = vadd.f32 %v875, %v959
          %v961 = vpop.f32.mrf.mxu0
          %962 = vmatprep.mubr.f32.mxu0 0.0
          %963 = vmatmul.mubr.f32.gmra.mxu0 %v687
          %v964 = vpop.f32.mrf.mxu0
          %v965 = vadd.f32 %v880, %v964
          %v966 = vpop.f32.mrf.mxu0
          %967 = vdwg.mxu0
          %vm968 = vcmp.gt.f32.partialorder %v950, 0.0
          %vm969 = vcmp.gt.f32.partialorder %v955, 0.0
          %vm970 = vcmp.gt.f32.partialorder %v960, 0.0
          %vm971 = vcmp.gt.f32.partialorder %v965, 0.0
          %v972 = vmul.f32 %v950, 0.2
          %v973 = vmul.f32 %v955, 0.2
          %v974 = vmul.f32 %v960, 0.2
          %v975 = vmul.f32 %v965, 0.2
          %v976 = vsel %vm968, %v950, %v972
          %v977 = vsel %vm969, %v955, %v973
          %v978 = vsel %vm970, %v960, %v974
          %v979 = vsel %vm971, %v965, %v975
          %v980 = vld [vmem:[%s7] sm:$0x1]
          %v982 = vlaneseq
          %v983 = vshrl.u32 %v982, 7
          %v984 = vsub.s32 0, %v983
          %v985 = vrot.slane %v980, %v984
          %v987 = vmul.f32 %v786, %v985
          %v988 = vmul.f32 %v787, %v985
          %v989 = vmul.f32 %v788, %v985
          %v990 = vmul.f32 %v789, %v985
          %v991 = vadd.f32 %v987, %v976
          %v992 = vadd.f32 %v988, %v977
          %v993 = vadd.f32 %v989, %v978
          %v994 = vadd.f32 %v990, %v979
          %v995 = vadd.f32 %v531, %v991
          %v996 = vadd.f32 %v532, %v992
          %v997 = vadd.f32 %v533, %v993
          %v998 = vadd.f32 %v534, %v994
          %v999 = vsub.f32 %v995, %v567
          %v1000 = vsub.f32 %v996, %v568
          %v1001 = vsub.f32 %v997, %v569
          %v1002 = vsub.f32 %v998, %v570
          %v1003 = vadd.f32 %v535, %v531
          %v1004 = vadd.f32 %v536, %v532
          %v1005 = vadd.f32 %v537, %v533
          %v1006 = vadd.f32 %v538, %v534
          %v1007 = vld [vmem:[%s8] sm:$0xff]
          %v1008 = vld [vmem:[%s8 + $0x8] sm:$0xff]
          %v1009 = vld [vmem:[%s8 + $0x10] sm:$0xff]
          %v1010 = vld [vmem:[%s8 + $0x18] sm:$0xff]
          %v1011 = vadd.f32 %v1003, %v999
          %v1012 = vadd.f32 %v1004, %v1000
          %v1013 = vadd.f32 %v1005, %v1001
          %v1014 = vadd.f32 %v1006, %v1002
          %v1016 = vsel %vm579, %v1011, 0
          %v1019 = vsel %vm579, %v1012, 0
          %v1022 = vsel %vm579, %v1013, 0
          %v1025 = vsel %vm579, %v1014, 0
          %1027 = vmatprep.subr.mxu0 0.0
          %1028 = vmatpush1.msra.mxu0 0.0
          %1029 = vmatprep.subr.mxu0 0.0
          %1030 = vmatpush1.msra.mxu0 0.0
          %1031 = vmatprep.subr.mxu0 0.0
          %1032 = vmatpush1.msra.mxu0 0.0
          %1033 = vmatprep.subr.mxu0 0.0
          %1034 = vmatpush1.msra.mxu0 0.0
          %1035 = vmatprep.subr.mxu0 0.0
          %1036 = vmatpush1.msra.mxu0 0.0
          %1037 = vmatprep.subr.mxu0 0.0
          %1038 = vmatpush1.msra.mxu0 0.0
          %1039 = vmatprep.subr.mxu0 0.0
          %1040 = vmatpush1.msra.mxu0 0.0
          %1041 = vmatprep.subr.mxu0 0.0
          %1042 = vmatpush1.msra.mxu0 0.0
          %1043 = vmatprep.subr.mxu0 0.0
          %1044 = vmatpush1.msra.mxu0 0.0
          %1045 = vmatprep.subr.mxu0 0.0
          %1046 = vmatpush1.msra.mxu0 0.0
          %1047 = vmatprep.subr.mxu0 0.0
          %1048 = vmatpush1.msra.mxu0 0.0
          %1049 = vmatprep.subr.mxu0 0.0
          %1050 = vmatpush1.msra.mxu0 0.0
          %1051 = vmatprep.subr.mxu0 0.0
          %1052 = vmatpush1.msra.mxu0 %v1010
          %1053 = vmatprep.subr.mxu0 0.0
          %1054 = vmatpush1.msra.mxu0 %v1009
          %1055 = vmatprep.subr.mxu0 0.0
          %1056 = vmatpush1.msra.mxu0 %v1008
          %1057 = vmatprep.subr.mxu0 0.0
          %1058 = vmatpush1.msra.mxu0 %v1007
          %1059 = vmatprep.subr.mxu0 0.0
          %1060 = vmatpush2.msra.mxu0 0.0
          %1061 = vmatprep.subr.mxu0 0.0
          %1062 = vmatpush2.msra.mxu0 0.0
          %1063 = vmatprep.subr.mxu0 0.0
          %1064 = vmatpush2.msra.mxu0 0.0
          %1065 = vmatprep.subr.mxu0 0.0
          %1066 = vmatpush2.msra.mxu0 0.0
          %1067 = vmatprep.subr.mxu0 0.0
          %1068 = vmatpush2.msra.mxu0 0.0
          %1069 = vmatprep.subr.mxu0 0.0
          %1070 = vmatpush2.msra.mxu0 0.0
          %1071 = vmatprep.subr.mxu0 0.0
          %1072 = vmatpush2.msra.mxu0 0.0
          %1073 = vmatprep.subr.mxu0 0.0
          %1074 = vmatpush2.msra.mxu0 0.0
          %1075 = vmatprep.subr.mxu0 0.0
          %1076 = vmatpush2.msra.mxu0 0.0
          %1077 = vmatprep.subr.mxu0 0.0
          %1078 = vmatpush2.msra.mxu0 0.0
          %1079 = vmatprep.subr.mxu0 0.0
          %1080 = vmatpush2.msra.mxu0 0.0
          %1081 = vmatprep.subr.mxu0 0.0
          %1082 = vmatpush2.msra.mxu0 0.0
          %1083 = vmatprep.subr.mxu0 0.0
          %1084 = vmatpush2.msra.mxu0 0.0
          %1085 = vmatprep.subr.mxu0 0.0
          %1086 = vmatpush2.msra.mxu0 0.0
          %1087 = vmatprep.subr.mxu0 0.0
          %1088 = vmatpush2.msra.mxu0 0.0
          %1089 = vmatprep.subr.mxu0 0.0
          %1090 = vmatpush2.msra.mxu0 0.0
          %1091 = vmatprep.mubr.f32.mxu0 0.0
          %1092 = vmatmul.mubr.f32.gmra.mxu0 %v1016
          %v1093 = vpop.f32.mrf.mxu0
          %v1094 = vadd.f32 0.0, %v1093
          %v1095 = vpop.f32.mrf.mxu0
          %1096 = vmatprep.mubr.f32.mxu0 0.0
          %1097 = vmatmul.mubr.f32.gmra.mxu0 %v1019
          %v1098 = vpop.f32.mrf.mxu0
          %v1099 = vadd.f32 0.0, %v1098
          %v1100 = vpop.f32.mrf.mxu0
          %1101 = vmatprep.mubr.f32.mxu0 0.0
          %1102 = vmatmul.mubr.f32.gmra.mxu0 %v1022
          %v1103 = vpop.f32.mrf.mxu0
          %v1104 = vadd.f32 0.0, %v1103
          %v1105 = vpop.f32.mrf.mxu0
          %1106 = vmatprep.mubr.f32.mxu0 0.0
          %1107 = vmatmul.mubr.f32.gmra.mxu0 %v1025
          %v1108 = vpop.f32.mrf.mxu0
          %v1109 = vadd.f32 0.0, %v1108
          %v1110 = vpop.f32.mrf.mxu0
          %1111 = vdwg.mxu0
          %v1112 = vadd.f32 %v535, 2.0
          %v1113 = vadd.f32 %v536, 2.0
          %v1114 = vadd.f32 %v537, 2.0
          %v1115 = vadd.f32 %v538, 2.0
          %v1116 = vrcp.pop %v1112
          %v1117 = vrcp.pop %v1113
          %v1118 = vrcp.pop %v1114
          %v1119 = vrcp.pop %v1115
          %1121 = vset.pattern.permute.xlu0 32
          %1122 = vperm.xlu0 %1121, %v1116
          %v1123 = vpop.permute.xlu0 %1122
          %1126 = vset.pattern.permute.xlu0 32
          %1127 = vperm.xlu0 %1126, %v1117
          %v1128 = vpop.permute.xlu0 %1127
          %1131 = vset.pattern.permute.xlu0 32
          %1132 = vperm.xlu0 %1131, %v1118
          %v1133 = vpop.permute.xlu0 %1132
          %1136 = vset.pattern.permute.xlu0 32
          %1137 = vperm.xlu0 %1136, %v1119
          %v1138 = vpop.permute.xlu0 %1137
          %v1140 = vmul.f32 %v1094, %v1123
          %v1141 = vmul.f32 %v1099, %v1128
          %v1142 = vmul.f32 %v1104, %v1133
          %v1143 = vmul.f32 %v1109, %v1138
          %1148 = vrot.lane.b32.xlu0 %v999, 32
          %v1149 = vpop.permute.xlu0 %1148
          %1150 = vrot.lane.b32.xlu0 %v1000, 32
          %v1151 = vpop.permute.xlu0 %1150
          %1152 = vrot.lane.b32.xlu0 %v1001, 32
          %v1153 = vpop.permute.xlu0 %1152
          %1154 = vrot.lane.b32.xlu0 %v1002, 32
          %v1155 = vpop.permute.xlu0 %1154
          %v1160 = vsel %vm579, %v1140, %v1149
          %v1161 = vsel %vm579, %v1141, %v1151
          %v1162 = vsel %vm579, %v1142, %v1153
          %v1163 = vsel %vm579, %v1143, %v1155
          %vm1164 = vcmask 523264
          %v1165 = vsel %vm1164, %v1160, 0.0
          %v1166 = vsel %vm1164, %v1161, 0.0
          %v1167 = vsel %vm1164, %v1162, 0.0
          %v1168 = vsel %vm1164, %v1163, 0.0
          %1169 = vst [vmem:[%s378] sm:$0xff] %v1165
          %1170 = vst [vmem:[%s378 + $0x8] sm:$0xff] %v1166
          %1171 = vst [vmem:[%s378 + $0x10] sm:$0xff] %v1167
          %1172 = vst [vmem:[%s378 + $0x18] sm:$0xff] %v1168
        $region64: #{tpu_custom_call.1} parent=55 // pred_fallthru
          _
        %s1173 = sand.u32 %s249, 1
        %s1174 = scalar_lea.sflag [#allocation4], %s1173
        %s1175 = sand.u32 %s249, 1
        %s1176 = smul.addr %s1175, 32
        %s1177 = scalar_lea.vmem [#allocation3], %s1176
        // Predicated region
        $region65: #{tpu_custom_call.1} parent=55 // pred_check
          %p1178 = pneg %p259
        $region66: #{tpu_custom_call.1} parent=55 // pred_check_branch
          %1180 = sbr.rel (%p1178) target = $region68
        $region67: #{tpu_custom_call.1} parent=55 // pred_region
          %s1181 = smul.u32 4, %s27
          %s1183 = ssub.s32 512, 512
          %1184 = vsyncadd %s1174, %s1183
          %s1185 = smul.addr %s1181, 128
          %s1186 = scalar_lea.hbm %s9, %s1185
          %s1187 = sshll.u32 %s1177, 4
          %s1188 = int_to_ptr.vmem [resolvable:$true] %s1187
          %1193 = dma.vmem_to_hbm [thread:$0]  %s1188, 512, %s1186, %s1174, 128, 128, 8
        $region68: #{tpu_custom_call.1} parent=55 // pred_fallthru
          _
      $region56: #{tpu_custom_call.1} parent=5 // pred_fallthru
        _
      %p1194 = scmp.le.s32.totalorder 2, %s18
      // Predicated region
      $region69: #{tpu_custom_call.1} parent=5 // pred_check
        %p1195 = pneg %p1194
      $region70: #{tpu_custom_call.1} parent=5 // pred_check_branch
        %1197 = sbr.rel (%p1195) target = $region72
      $region71: #{tpu_custom_call.1} parent=5 // pred_region
        %s1198 = ssub.s32 %s18, 2
        // Predicated region
        $region73: #{tpu_custom_call.1} parent=71 // pred_check
          %p1199 = pneg %p265
        $region74: #{tpu_custom_call.1} parent=71 // pred_check_branch
          %1201 = sbr.rel (%p1199) target = $region76
        $region75: #{tpu_custom_call.1} parent=71 // pred_region
          %s1202 = sand.u32 %s250, 1
          %s1203 = scalar_lea.sflag [#allocation4], %s1202
          %s1204 = sand.u32 %s250, 1
          %s1205 = smul.addr %s1204, 32
          %s1206 = scalar_lea.vmem [#allocation3], %s1205
          %1207 = dma.done %s1203, 512
        $region76: #{tpu_custom_call.1} parent=71 // pred_fallthru
          _
      $region72: #{tpu_custom_call.1} parent=5 // pred_fallthru
        _
    $region6: #{tpu_custom_call.1} parent=1 // loop_footer
      %s22 = sadd.s32 1, %s18
    $region7: #{tpu_custom_call.1} parent=1 // loop_footer_branch
      %17 = sbr.rel target = $region3
    $region8: #{tpu_custom_call.1} parent=1 // loop_exit
      _
    %1208 = vsyncpa [#allocation4], 1
    %s1209 = scalar_lea.sflag [#allocation4], 1
    %1210 = vsyncpa %s1209, 1

</llo_original>
